<compile_context>
chip_gen: v6e
topology: v6e:2x2x1
jax: 0.10.0
libtpu: 0.0.40
codegen_flags: <defaults>
</compile_context>

<pallas_src>
import functools

import jax
import jax.numpy as jnp
from jax.experimental import pallas as pl
from jax.experimental.pallas import tpu as pltpu


# --------------------------------------------------------------------------
# VMEM budget helper
# --------------------------------------------------------------------------
@functools.lru_cache(maxsize=None)
def _vmem_limit_bytes():
    cap = 64 << 20  # conservative (v7x-sized) fallback
    try:
        cap = int(getattr(pltpu.get_tpu_info(), "vmem_capacity_bytes", cap))
    except Exception:
        pass
    cap = max(cap, 32 << 20)
    # Leave ~1/3 headroom for compiler scratch; never ask for more than 96 MiB.
    return int(min((cap * 2) // 3, 96 << 20))


# --------------------------------------------------------------------------
# Fused path: whole x resident in VMEM (1 read + 1 write of x)
# --------------------------------------------------------------------------
def _fused_kernel(perm_ref, x_ref, wb_ref, o_ref, st_ref, sp_ref, *,
                  eps, n, hw, apply_adain):
    """x_ref: (N, C, HW). wb_ref: (2, C, 1) = [weight; bias]. perm_ref: SMEM (N,).

    st_ref / sp_ref: VMEM (N, C, 2) scratch holding [mean, ssd] for the
    content / permuted-style instance stats.
    """
    x = x_ref[...].astype(jnp.float32)                       # (N, C, HW)
    m = jnp.mean(x, axis=-1, keepdims=True)                  # (N, C, 1)
    d = x - m
    ssd = jnp.sum(d * d, axis=-1, keepdims=True)             # (N, C, 1)

    if apply_adain:
        st_ref[:, :, 0:1] = m
        st_ref[:, :, 1:2] = ssd
        # Permute the tiny per-(n,c) stats (never gather x itself):
        # dynamic leading-dim ref indexing with SMEM scalars, unrolled over N.
        for i in range(n):
            sp_ref[i] = st_ref[perm_ref[i]]
        s_m = sp_ref[:, :, 0:1]
        s_ssd = sp_ref[:, :, 1:2]
        inv_hw1 = 1.0 / (hw - 1)                             # torch.var ddof=1
        c_std = jnp.sqrt(ssd * inv_hw1 + eps)
        s_std = jnp.sqrt(s_ssd * inv_hw1 + eps)
        a1 = s_std / (c_std + eps)                           # double-eps kept
        b1 = s_m - m * a1
        f_mean = a1 * m + b1
        f_varb = (a1 * a1) * (ssd * (1.0 / hw))
    else:
        a1 = jnp.ones_like(m)
        b1 = jnp.zeros_like(m)
        f_mean = m
        f_varb = ssd * (1.0 / hw)

    # BatchNorm statistics of feat = a1*x + b1 (never materialized):
    inv_n = 1.0 / n
    bn_mean = jnp.sum(f_mean, axis=0, keepdims=True) * inv_n          # (1, C, 1)
    dm = f_mean - bn_mean
    bn_var = jnp.sum(f_varb + dm * dm, axis=0, keepdims=True) * inv_n

    w = wb_ref[0:1, :, :]                                             # (1, C, 1)
    bvec = wb_ref[1:2, :, :]
    inv_g = jax.lax.rsqrt(bn_var + eps) * w
    A = a1 * inv_g                                                    # (N, C, 1)
    B = (b1 - bn_mean) * inv_g + bvec
    o_ref[...] = (x * A + B).astype(o_ref.dtype)


def _fused_call(x3, perm, wb, *, eps, apply_adain, vmem_limit):
    N, C, HW = x3.shape
    kern = functools.partial(_fused_kernel, eps=eps, n=N, hw=HW,
                             apply_adain=apply_adain)
    return pl.pallas_call(
        kern,
        out_shape=jax.ShapeDtypeStruct((N, C, HW), x3.dtype),
        grid_spec=pltpu.PrefetchScalarGridSpec(
            num_scalar_prefetch=1,
            grid=(1,),
            in_specs=[pl.BlockSpec((N, C, HW), lambda i, p: (0, 0, 0)),
                      pl.BlockSpec((2, C, 1), lambda i, p: (0, 0, 0))],
            out_specs=pl.BlockSpec((N, C, HW), lambda i, p: (0, 0, 0)),
            scratch_shapes=[pltpu.VMEM((N, C, 2), jnp.float32),
                            pltpu.VMEM((N, C, 2), jnp.float32)]),
        compiler_params=pltpu.CompilerParams(
            dimension_semantics=("arbitrary",),
            vmem_limit_bytes=vmem_limit),
    )(perm, x3, wb)


# --------------------------------------------------------------------------
# Streaming path kernels (2 reads + 1 write of x)
# --------------------------------------------------------------------------
def _stats_kernel(x_ref, st_ref):
    """Exact per-row mean / sum-of-squared-deviations (HW fits in one block)."""
    x = x_ref[...].astype(jnp.float32)                       # (tr, hw)
    m = jnp.mean(x, axis=-1, keepdims=True)
    d = x - m
    st_ref[:, 0:1] = m
    st_ref[:, 1:2] = jnp.sum(d * d, axis=-1, keepdims=True)


def _stats_acc_kernel(x_ref, st_ref, *, hw_total, hw_chunk):
    """Per-row sum / sum-of-squares accumulated across HW chunks (lane-masked),
    converted to mean / ssd on the last chunk."""
    j = pl.program_id(1)

    @pl.when(j == 0)
    def _():
        st_ref[...] = jnp.zeros_like(st_ref)

    x = x_ref[...].astype(jnp.float32)                       # (tr, hw_chunk)
    col = jax.lax.broadcasted_iota(jnp.int32, x.shape, 1) + j * hw_chunk
    x = jnp.where(col < hw_total, x, 0.0)                    # mask ragged lanes
    st_ref[:, 0:1] += jnp.sum(x, axis=-1, keepdims=True)
    st_ref[:, 1:2] += jnp.sum(x * x, axis=-1, keepdims=True)

    @pl.when(j == pl.num_programs(1) - 1)
    def _():
        sm = st_ref[:, 0:1]
        ssq = st_ref[:, 1:2]
        mean = sm * (1.0 / hw_total)
        st_ref[:, 0:1] = mean
        st_ref[:, 1:2] = jnp.maximum(ssq - sm * mean, 0.0)


def _apply_kernel(x_ref, ab_ref, o_ref):
    """Fused AdaIN+BatchNorm affine: out = x * A + B, A/B per (n, c) row."""
    x = x_ref[...].astype(jnp.float32)
    a = ab_ref[:, 0:1]
    b = ab_ref[:, 1:2]
    o_ref[...] = (x * a + b).astype(o_ref.dtype)


def _stream_tiles(nc, hw, itemsize, budget, row_tile=None, hw_chunk=None):
    """Pick (row_tile, hw_chunk).

    row_tile: largest multiple of 8 under budget (or the full NC -> always a
    legal block).  hw_chunk: full HW when it fits, otherwise a multiple of 128
    so at least 8 rows fit under budget.  Ragged last tiles are handled by the
    pl.cdiv grid (+ lane masking in the stats pass)."""
    budget = max(int(budget), 1 << 20)
    if hw_chunk is not None:
        hw_chunk = max(128, (int(hw_chunk) // 128) * 128)
        if hw_chunk >= hw:
            hw_chunk = hw
    elif 8 * hw * itemsize <= budget:
        hw_chunk = hw
    else:
        hw_chunk = max(128, ((budget // (8 * itemsize)) // 128) * 128)
        if hw_chunk >= hw:
            hw_chunk = hw

    if row_tile is not None:
        row_tile = min(int(row_tile), nc)
        if row_tile < nc:
            row_tile = max(8, (row_tile // 8) * 8)
    else:
        max_rows = max(8, ((budget // (hw_chunk * itemsize)) // 8) * 8)
        row_tile = nc if nc <= max_rows else max_rows
    return row_tile, hw_chunk


# --------------------------------------------------------------------------
# Public wrapper
# --------------------------------------------------------------------------
@functools.partial(
    jax.jit,
    static_argnames=("eps", "apply_permute", "force_path",
                     "_test_row_tile", "_test_hw_chunk"))
def padain_with_batchnorm2d(x, perm, weight, bias, *, eps=1e-5,
                            apply_permute=True, force_path=None,
                            _test_row_tile=None, _test_hw_chunk=None):
    """x: (N, C, H, W). perm: (N,) int batch permutation. weight/bias: (C,)."""
    N, C, H, W = x.shape
    HW = H * W
    NC = N * C
    itemsize = jnp.dtype(x.dtype).itemsize
    apply_adain = apply_permute and not (H == 1 and W == 1)  # module skips 1x1
    vmem_limit = _vmem_limit_bytes()
    cp_base = dict(vmem_limit_bytes=vmem_limit)

    perm = perm.astype(jnp.int32)
    w32 = weight.astype(jnp.float32)
    b32 = bias.astype(jnp.float32)

    # ---- Fused resident-x path: 1 read + 1 write of x. ----------------------
    # Conservative VMEM estimate: (in + out) x2 buffers + ~2 f32 temporaries.
    fused_need = NC * HW * (4 * itemsize + 8)
    use_fused = (force_path != "streaming"
                 and _test_row_tile is None and _test_hw_chunk is None
                 and N <= 128
                 and fused_need <= vmem_limit - (8 << 20))
    if force_path == "fused":
        use_fused = True
    if use_fused:
        wb = jnp.stack([w32, b32], axis=0)[:, :, None]        # (2, C, 1)
        out3 = _fused_call(x.reshape(N, C, HW), perm, wb, eps=eps,
                           apply_adain=apply_adain, vmem_limit=vmem_limit)
        return out3.reshape(N, C, H, W)

    # ---- Streaming two-pass path: 2 reads + 1 write of x. -------------------
    x2 = x.reshape(NC, HW)

    # Pass 1: per-(n,c) instance statistics (lane reductions only).
    # Working set ~2-3x the tile -> larger budget than pass 2.
    tr1, hwc1 = _stream_tiles(NC, HW, itemsize,
                              budget=min(16 << 20, vmem_limit // 4),
                              row_tile=_test_row_tile, hw_chunk=_test_hw_chunk)
    R1, J1 = pl.cdiv(NC, tr1), pl.cdiv(HW, hwc1)
    if hwc1 == HW:
        kern1 = _stats_kernel
    else:
        kern1 = functools.partial(_stats_acc_kernel, hw_total=HW, hw_chunk=hwc1)
    stats = pl.pallas_call(
        kern1,
        out_shape=jax.ShapeDtypeStruct((NC, 2), jnp.float32),
        grid=(R1, J1),
        in_specs=[pl.BlockSpec((tr1, hwc1), lambda i, j: (i, j))],
        out_specs=pl.BlockSpec((tr1, 2), lambda i, j: (i, 0)),
        compiler_params=pltpu.CompilerParams(
            dimension_semantics=("parallel", "arbitrary"), **cp_base),
    )(x2)

    c_mean = stats[:, 0].reshape(N, C)
    ssd = stats[:, 1].reshape(N, C)
    var_b = ssd / HW                                          # biased (BN) var

    # Tiny (N, C) fold: AdaIN + BN collapsed into per-(n,c) A, B (jit-fused).
    if apply_adain:
        var_u = ssd / (HW - 1)                                # torch.var ddof=1
        c_std = jnp.sqrt(var_u + eps)
        s_mean = c_mean[perm]                                 # permute stats only
        s_std = c_std[perm]
        a1 = s_std / (c_std + eps)                            # double-eps kept
        b1 = s_mean - c_mean * a1
    else:
        a1 = jnp.ones_like(c_mean)
        b1 = jnp.zeros_like(c_mean)

    f_mean = a1 * c_mean + b1
    f_varb = a1 * a1 * var_b
    bn_mean = jnp.mean(f_mean, axis=0)                                    # (C,)
    bn_var = jnp.mean(f_varb + (f_mean - bn_mean[None, :]) ** 2, axis=0)  # (C,)
    inv_g = jax.lax.rsqrt(bn_var + eps) * w32
    A = a1 * inv_g[None, :]
    B = (b1 - bn_mean[None, :]) * inv_g[None, :] + b32[None, :]
    ab = jnp.stack([A, B], axis=-1).reshape(NC, 2).astype(jnp.float32)

    # Pass 2: one fused multiply-add per element, streamed over (row, HW) tiles.
    tr2, hwc2 = _stream_tiles(NC, HW, itemsize,
                              budget=min(8 << 20, vmem_limit // 6),
                              row_tile=_test_row_tile, hw_chunk=_test_hw_chunk)
    R2, J2 = pl.cdiv(NC, tr2), pl.cdiv(HW, hwc2)
    out2 = pl.pallas_call(
        _apply_kernel,
        out_shape=jax.ShapeDtypeStruct((NC, HW), x.dtype),
        grid=(R2, J2),
        in_specs=[pl.BlockSpec((tr2, hwc2), lambda i, j: (i, j)),
                  pl.BlockSpec((tr2, 2), lambda i, j: (i, 0))],
        out_specs=pl.BlockSpec((tr2, hwc2), lambda i, j: (i, j)),
        compiler_params=pltpu.CompilerParams(
            dimension_semantics=("parallel", "parallel"), **cp_base),
    )(x2, ab)
    return out2.reshape(N, C, H, W)


# --------------------------------------------------------------------------
# Pure-JAX reference (mirrors the PyTorch forward, training mode)
# --------------------------------------------------------------------------
def _reference(x, perm, weight, bias, eps=1e-5, apply_permute=True):
    N, C, H, W = x.shape
    feat = x
    if apply_permute and not (H == 1 and W == 1):
        xs = x[perm]

        def mean_std(f):
            v = f.reshape(N, C, -1)
            m = v.mean(axis=2).reshape(N, C, 1, 1)
            s = jnp.sqrt(v.var(axis=2, ddof=1).reshape(N, C, 1, 1) + eps)
            return m, s

        s_m, s_s = mean_std(xs)
        c_m, c_s = mean_std(x)
        feat = (x - c_m) / (c_s + eps) * s_s + s_m
    bm = feat.mean(axis=(0, 2, 3), keepdims=True)
    bv = ((feat - bm) ** 2).mean(axis=(0, 2, 3), keepdims=True)
    return (feat - bm) / jnp.sqrt(bv + eps) * weight.reshape(1, C, 1, 1) \
        + bias.reshape(1, C, 1, 1)


if __name__ == "__main__":
    key = jax.random.PRNGKey(0)
    k1, k2 = jax.random.split(key)

    # Deterministic stand-ins for the module's stochastic glue:
    #   random.random() < p -> apply_permute flag; torch.randperm(N) -> perm.
    N, C, H, W = 2, 4, 16, 16
    x = jax.random.normal(k1, (N, C, H, W), dtype=jnp.float32)
    perm = jnp.array([1, 0], dtype=jnp.int32)
    weight = jnp.linspace(0.5, 1.5, C, dtype=jnp.float32)
    bias = jnp.linspace(-0.2, 0.2, C, dtype=jnp.float32)

    def check(out, ref):
        out = jax.block_until_ready(out)
        assert out.shape == ref.shape
        assert jnp.allclose(out, ref, atol=2e-3, rtol=2e-3), \
            float(jnp.max(jnp.abs(out - ref)))

    # 1) Fused resident-x path (AdaIN + BN).
    check(padain_with_batchnorm2d(x, perm, weight, bias,
                                  eps=1e-5, apply_permute=True),
          _reference(x, perm, weight, bias, 1e-5, True))

    # 2) Fused path, no-permute branch (plain BatchNorm2d).
    check(padain_with_batchnorm2d(x, perm, weight, bias,
                                  eps=1e-5, apply_permute=False),
          _reference(x, perm, weight, bias, 1e-5, False))

    # 3) Streaming two-pass path (exact stats kernel, single HW block).
    check(padain_with_batchnorm2d(x, perm, weight, bias,
                                  eps=1e-5, apply_permute=True,
                                  force_path="streaming"),
          _reference(x, perm, weight, bias, 1e-5, True))

    # 4) Streaming path with ragged row tiles + HW chunking + lane masking
    #    (NC=10 not a multiple of 8; HW=144 not a multiple of 128).
    N2, C2, H2, W2 = 2, 5, 12, 12
    x4 = jax.random.normal(k2, (N2, C2, H2, W2), dtype=jnp.float32)
    perm4 = jnp.array([1, 0], dtype=jnp.int32)
    w4 = jnp.linspace(0.8, 1.2, C2, dtype=jnp.float32)
    b4 = jnp.linspace(-0.1, 0.1, C2, dtype=jnp.float32)
    check(padain_with_batchnorm2d(x4, perm4, w4, b4,
                                  eps=1e-5, apply_permute=True,
                                  force_path="streaming",
                                  _test_row_tile=8, _test_hw_chunk=128),
          _reference(x4, perm4, w4, b4, 1e-5, True))

    print("KERNEL_OK")
</pallas_src>

<mosaic_0001>
module attributes {stable_mosaic.version = 11 : i64} {
  func.func @_fused_kernel(%arg0: i32, %arg1: memref<2xi32, #tpu.memory_space<smem>>, %arg2: memref<2x4x256xf32, #tpu.memory_space<vmem>>, %arg3: memref<2x4x1xf32, #tpu.memory_space<vmem>>, %arg4: memref<2x4x256xf32, #tpu.memory_space<vmem>>, %arg5: memref<2x4x2xf32, #tpu.memory_space<vmem>>, %arg6: memref<2x4x2xf32, #tpu.memory_space<vmem>>) attributes {dimension_semantics = [#tpu.dimension_semantics<arbitrary>], iteration_bounds = array<i64: 1>, scalar_prefetch = 1 : i64, scratch_operands = 2 : i64, tpu.core_type = #tpu.core_type<tc>, window_params = [{pipeline_mode = #tpu.pipeline_mode<synchronous>, transform_indices = @transform_0, window_bounds = array<i64: 2, 4, 256>}, {pipeline_mode = #tpu.pipeline_mode<synchronous>, transform_indices = @transform_1, window_bounds = array<i64: 2, 4, 1>}, {pipeline_mode = #tpu.pipeline_mode<synchronous>, transform_indices = @transform_2, window_bounds = array<i64: 2, 4, 256>}]} {
    %c0 = arith.constant 0 : index
    %c0_0 = arith.constant 0 : index
    %c0_1 = arith.constant 0 : index
    %0 = vector.load %arg2[%c0, %c0_0, %c0_1] : memref<2x4x256xf32, #tpu.memory_space<vmem>>, vector<2x4x256xf32>
    %cst = arith.constant dense<0.000000e+00> : vector<2x4xf32>
    %1 = vector.multi_reduction <add>, %0, %cst [2] : vector<2x4x256xf32> to vector<2x4xf32>
    %2 = vector.shape_cast %1 : vector<2x4xf32> to vector<2x4x1xf32>
    %cst_2 = arith.constant 2.560000e+02 : f32
    %3 = vector.broadcast %cst_2 : f32 to vector<2x4x1xf32>
    %4 = arith.divf %2, %3 : vector<2x4x1xf32>
    %5 = vector.broadcast %4 : vector<2x4x1xf32> to vector<2x4x256xf32>
    %6 = arith.subf %0, %5 : vector<2x4x256xf32>
    %7 = arith.mulf %6, %6 : vector<2x4x256xf32>
    %cst_3 = arith.constant dense<0.000000e+00> : vector<2x4xf32>
    %8 = vector.multi_reduction <add>, %7, %cst_3 [2] : vector<2x4x256xf32> to vector<2x4xf32>
    %9 = vector.shape_cast %8 : vector<2x4xf32> to vector<2x4x1xf32>
    %c0_4 = arith.constant 0 : index
    %c0_5 = arith.constant 0 : index
    %c0_6 = arith.constant 0 : index
    %10 = vector.load %arg5[%c0_4, %c0_5, %c0_6] : memref<2x4x2xf32, #tpu.memory_space<vmem>>, vector<2x4x1xf32>
    tpu.vector_store %arg5[%c0_4, %c0_5, %c0_6], %4 {strides = array<i32>} : memref<2x4x2xf32, #tpu.memory_space<vmem>>, vector<2x4x1xf32>,
    %c0_7 = arith.constant 0 : index
    %c0_8 = arith.constant 0 : index
    %c1 = arith.constant 1 : index
    %11 = vector.load %arg5[%c0_7, %c0_8, %c1] : memref<2x4x2xf32, #tpu.memory_space<vmem>>, vector<2x4x1xf32>
    tpu.vector_store %arg5[%c0_7, %c0_8, %c1], %9 {strides = array<i32>} : memref<2x4x2xf32, #tpu.memory_space<vmem>>, vector<2x4x1xf32>,
    %c0_9 = arith.constant 0 : index
    %12 = memref.load %arg1[%c0_9] : memref<2xi32, #tpu.memory_space<smem>>
    %13 = arith.index_cast %12 : i32 to index
    %c0_10 = arith.constant 0 : index
    %c0_11 = arith.constant 0 : index
    %14 = vector.load %arg5[%13, %c0_10, %c0_11] : memref<2x4x2xf32, #tpu.memory_space<vmem>>, vector<1x4x2xf32>
    %15 = vector.shape_cast %14 : vector<1x4x2xf32> to vector<4x2xf32>
    %c0_12 = arith.constant 0 : index
    %c0_13 = arith.constant 0 : index
    %c0_14 = arith.constant 0 : index
    %16 = vector.load %arg6[%c0_12, %c0_13, %c0_14] : memref<2x4x2xf32, #tpu.memory_space<vmem>>, vector<1x4x2xf32>
    %17 = vector.shape_cast %16 : vector<1x4x2xf32> to vector<4x2xf32>
    %18 = vector.shape_cast %15 : vector<4x2xf32> to vector<1x4x2xf32>
    tpu.vector_store %arg6[%c0_12, %c0_13, %c0_14], %18 {strides = array<i32>} : memref<2x4x2xf32, #tpu.memory_space<vmem>>, vector<1x4x2xf32>,
    %c1_15 = arith.constant 1 : index
    %19 = memref.load %arg1[%c1_15] : memref<2xi32, #tpu.memory_space<smem>>
    %20 = arith.index_cast %19 : i32 to index
    %c0_16 = arith.constant 0 : index
    %c0_17 = arith.constant 0 : index
    %21 = vector.load %arg5[%20, %c0_16, %c0_17] : memref<2x4x2xf32, #tpu.memory_space<vmem>>, vector<1x4x2xf32>
    %22 = vector.shape_cast %21 : vector<1x4x2xf32> to vector<4x2xf32>
    %c1_18 = arith.constant 1 : index
    %c0_19 = arith.constant 0 : index
    %c0_20 = arith.constant 0 : index
    %23 = vector.load %arg6[%c1_18, %c0_19, %c0_20] : memref<2x4x2xf32, #tpu.memory_space<vmem>>, vector<1x4x2xf32>
    %24 = vector.shape_cast %23 : vector<1x4x2xf32> to vector<4x2xf32>
    %25 = vector.shape_cast %22 : vector<4x2xf32> to vector<1x4x2xf32>
    tpu.vector_store %arg6[%c1_18, %c0_19, %c0_20], %25 {strides = array<i32>} : memref<2x4x2xf32, #tpu.memory_space<vmem>>, vector<1x4x2xf32>,
    %c0_21 = arith.constant 0 : index
    %c0_22 = arith.constant 0 : index
    %c0_23 = arith.constant 0 : index
    %26 = vector.load %arg6[%c0_21, %c0_22, %c0_23] : memref<2x4x2xf32, #tpu.memory_space<vmem>>, vector<2x4x1xf32>
    %c0_24 = arith.constant 0 : index
    %c0_25 = arith.constant 0 : index
    %c1_26 = arith.constant 1 : index
    %27 = vector.load %arg6[%c0_24, %c0_25, %c1_26] : memref<2x4x2xf32, #tpu.memory_space<vmem>>, vector<2x4x1xf32>
    %cst_27 = arith.constant 0.00392156886 : f32
    %28 = vector.broadcast %cst_27 : f32 to vector<2x4x1xf32>
    %29 = arith.mulf %9, %28 : vector<2x4x1xf32>
    %cst_28 = arith.constant 9.99999974E-6 : f32
    %30 = vector.broadcast %cst_28 : f32 to vector<2x4x1xf32>
    %31 = arith.addf %29, %30 : vector<2x4x1xf32>
    %32 = math.sqrt %31 : vector<2x4x1xf32>
    %cst_29 = arith.constant 0.00392156886 : f32
    %33 = vector.broadcast %cst_29 : f32 to vector<2x4x1xf32>
    %34 = arith.mulf %27, %33 : vector<2x4x1xf32>
    %cst_30 = arith.constant 9.99999974E-6 : f32
    %35 = vector.broadcast %cst_30 : f32 to vector<2x4x1xf32>
    %36 = arith.addf %34, %35 : vector<2x4x1xf32>
    %37 = math.sqrt %36 : vector<2x4x1xf32>
    %cst_31 = arith.constant 9.99999974E-6 : f32
    %38 = vector.broadcast %cst_31 : f32 to vector<2x4x1xf32>
    %39 = arith.addf %32, %38 : vector<2x4x1xf32>
    %40 = arith.divf %37, %39 : vector<2x4x1xf32>
    %41 = arith.mulf %4, %40 : vector<2x4x1xf32>
    %42 = arith.subf %26, %41 : vector<2x4x1xf32>
    %43 = arith.mulf %40, %4 : vector<2x4x1xf32>
    %44 = arith.addf %43, %42 : vector<2x4x1xf32>
    %45 = arith.mulf %40, %40 : vector<2x4x1xf32>
    %cst_32 = arith.constant 3.906250e-03 : f32
    %46 = vector.broadcast %cst_32 : f32 to vector<2x4x1xf32>
    %47 = arith.mulf %9, %46 : vector<2x4x1xf32>
    %48 = arith.mulf %45, %47 : vector<2x4x1xf32>
    %cst_33 = arith.constant dense<0.000000e+00> : vector<4x1xf32>
    %49 = vector.multi_reduction <add>, %44, %cst_33 [0] : vector<2x4x1xf32> to vector<4x1xf32>
    %50 = vector.shape_cast %49 : vector<4x1xf32> to vector<1x4x1xf32>
    %cst_34 = arith.constant 5.000000e-01 : f32
    %51 = vector.broadcast %cst_34 : f32 to vector<1x4x1xf32>
    %52 = arith.mulf %50, %51 : vector<1x4x1xf32>
    %53 = vector.broadcast %52 : vector<1x4x1xf32> to vector<2x4x1xf32>
    %54 = arith.subf %44, %53 : vector<2x4x1xf32>
    %55 = arith.mulf %54, %54 : vector<2x4x1xf32>
    %56 = arith.addf %48, %55 : vector<2x4x1xf32>
    %cst_35 = arith.constant dense<0.000000e+00> : vector<4x1xf32>
    %57 = vector.multi_reduction <add>, %56, %cst_35 [0] : vector<2x4x1xf32> to vector<4x1xf32>
    %58 = vector.shape_cast %57 : vector<4x1xf32> to vector<1x4x1xf32>
    %cst_36 = arith.constant 5.000000e-01 : f32
    %59 = vector.broadcast %cst_36 : f32 to vector<1x4x1xf32>
    %60 = arith.mulf %58, %59 : vector<1x4x1xf32>
    %c0_37 = arith.constant 0 : index
    %c0_38 = arith.constant 0 : index
    %c0_39 = arith.constant 0 : index
    %61 = vector.load %arg3[%c0_37, %c0_38, %c0_39] : memref<2x4x1xf32, #tpu.memory_space<vmem>>, vector<1x4x1xf32>
    %c1_40 = arith.constant 1 : index
    %c0_41 = arith.constant 0 : index
    %c0_42 = arith.constant 0 : index
    %62 = vector.load %arg3[%c1_40, %c0_41, %c0_42] : memref<2x4x1xf32, #tpu.memory_space<vmem>>, vector<1x4x1xf32>
    %cst_43 = arith.constant 9.99999974E-6 : f32
    %63 = vector.broadcast %cst_43 : f32 to vector<1x4x1xf32>
    %64 = arith.addf %60, %63 : vector<1x4x1xf32>
    %65 = math.rsqrt %64 : vector<1x4x1xf32>
    %66 = arith.mulf %65, %61 : vector<1x4x1xf32>
    %67 = vector.broadcast %66 : vector<1x4x1xf32> to vector<2x4x1xf32>
    %68 = arith.mulf %40, %67 : vector<2x4x1xf32>
    %69 = vector.broadcast %52 : vector<1x4x1xf32> to vector<2x4x1xf32>
    %70 = arith.subf %42, %69 : vector<2x4x1xf32>
    %71 = vector.broadcast %66 : vector<1x4x1xf32> to vector<2x4x1xf32>
    %72 = arith.mulf %70, %71 : vector<2x4x1xf32>
    %73 = vector.broadcast %62 : vector<1x4x1xf32> to vector<2x4x1xf32>
    %74 = arith.addf %72, %73 : vector<2x4x1xf32>
    %75 = vector.broadcast %68 : vector<2x4x1xf32> to vector<2x4x256xf32>
    %76 = arith.mulf %0, %75 : vector<2x4x256xf32>
    %77 = vector.broadcast %74 : vector<2x4x1xf32> to vector<2x4x256xf32>
    %78 = arith.addf %76, %77 : vector<2x4x256xf32>
    %c0_44 = arith.constant 0 : index
    %c0_45 = arith.constant 0 : index
    %c0_46 = arith.constant 0 : index
    %79 = vector.load %arg4[%c0_44, %c0_45, %c0_46] : memref<2x4x256xf32, #tpu.memory_space<vmem>>, vector<2x4x256xf32>
    tpu.vector_store %arg4[%c0_44, %c0_45, %c0_46], %78 {strides = array<i32>} : memref<2x4x256xf32, #tpu.memory_space<vmem>>, vector<2x4x256xf32>,
    return
  }
  func.func @transform_0(%arg0: i32, %arg1: memref<2xi32, #tpu.memory_space<smem>>) -> (i32, i32, i32) {
    %c0_i32 = arith.constant 0 : i32
    %c0_i32_0 = arith.constant 0 : i32
    %c0_i32_1 = arith.constant 0 : i32
    %c0_i32_2 = arith.constant 0 : i32
    return %c0_i32, %c0_i32_0, %c0_i32_1 : i32, i32, i32
  }
  func.func @transform_1(%arg0: i32, %arg1: memref<2xi32, #tpu.memory_space<smem>>) -> (i32, i32, i32) {
    %c0_i32 = arith.constant 0 : i32
    %c0_i32_0 = arith.constant 0 : i32
    %c0_i32_1 = arith.constant 0 : i32
    %c0_i32_2 = arith.constant 0 : i32
    return %c0_i32, %c0_i32_0, %c0_i32_1 : i32, i32, i32
  }
  func.func @transform_2(%arg0: i32, %arg1: memref<2xi32, #tpu.memory_space<smem>>) -> (i32, i32, i32) {
    %c0_i32 = arith.constant 0 : i32
    %c0_i32_0 = arith.constant 0 : i32
    %c0_i32_1 = arith.constant 0 : i32
    %c0_i32_2 = arith.constant 0 : i32
    return %c0_i32, %c0_i32_0, %c0_i32_1 : i32, i32, i32
  }
}

</mosaic_0001>

<llo_original>
// kernel: padain_with_batchnorm2d.1
$region0: #{padain_with_batchnorm2d.1}
  #allocation0 [shape = 'u32[]', space=smem, size = 0x4, offset = 0x4, fixed_abs, tag = 'smem constant byte address 0x4 - core index']
  #allocation1 [shape = 'u32[144,128]{1,0:T(1,128)}', space=vmem, size = 0x12000, scoped, tag = 'internal scratch']
  #allocation2 [shape = 'f32[2,4,2]{2,1,0:T(4,128)}', space=vmem, size = 0x1000, scoped, tag = 'scratch operand']
  #allocation3 [shape = 'f32[2,4,2]{2,1,0:T(4,128)}', space=vmem, size = 0x1000, scoped, tag = 'scratch operand']
  #allocation4 [shape = 's32[1]{0}', space=sflag, size = 0x4, scoped, tag = 'scoped memory for padain_with_batchnorm2d.1']
  #allocation5 [shape = 'u8[512]{0}', space=smem, size = 0x200, scoped, tag = 'prefetched SMEM operand 0']
  %s0 = inlined_call_operand.vmem [shape: s32[2], index: 0, kind: input, shape index: {}]
  %s1 = inlined_call_operand.vmem [shape: f32[2,4,256], index: 1, kind: input, shape index: {}]
  %s2 = inlined_call_operand.vmem [shape: f32[2,4,1], index: 2, kind: input, shape index: {}]
  %s3 = inlined_call_operand.vmem [shape: f32[2,4,256], index: 3, kind: output, shape index: {}]
  %s4 = sld [smem:[#allocation0]]
  $region18: #{padain_with_batchnorm2d.1} parent=0
    _
  %s6 = ssub.s32 1, %s4
  %s7 = scalar_select 0, %s6, %s4
  %s8 = sshll.u32 %s0, 4
  %s9 = int_to_ptr.vmem [resolvable:$true] %s8
  %11 = dma.vmem_to_smem %s9, 16, [#allocation5], [#allocation4]
  %12 = dma.done [#allocation4], 16
  %13 = sfence
  // Predicated region
  $region2: #{padain_with_batchnorm2d.1} parent=0 // pred_check
    _
  $region3: #{padain_with_batchnorm2d.1} parent=0 // pred_check_branch
    %15 = sbr.rel (0) target = $region5
  $region4: #{padain_with_batchnorm2d.1} parent=0 // pred_region
    _
  $region5: #{padain_with_batchnorm2d.1} parent=0 // pred_fallthru
    _
  // Predicated region
  $region6: #{padain_with_batchnorm2d.1} parent=0 // pred_check
    _
  $region7: #{padain_with_batchnorm2d.1} parent=0 // pred_check_branch
    %17 = sbr.rel (0) target = $region9
  $region8: #{padain_with_batchnorm2d.1} parent=0 // pred_region
    _
  $region9: #{padain_with_batchnorm2d.1} parent=0 // pred_fallthru
    _
  %v18 = vld [vmem:[%s1] sm:$0xff]
  %v19 = vld [vmem:[%s1 + $0x8] sm:$0xff]
  %v22 = vcombine.high %v18, %v18
  %v23 = vcombine.high %v19, %v19
  %vm26 = vcmask 1043456
  %v27 = vsel %vm26, %v18, 0.0
  %v28 = vsel %vm26, %v22, 0.0
  %v29 = vadd.f32 %v27, %v28
  %30 = vadd.xlane.f32.xlu0 %v29
  %v31 = vpop.xlane.xlu0 %30
  %v32 = vsel %vm26, %v19, 0.0
  %v33 = vsel %vm26, %v23, 0.0
  %v34 = vadd.f32 %v32, %v33
  %35 = vadd.xlane.f32.xlu0 %v34
  %v36 = vpop.xlane.xlu0 %35
  %v37 = vrcp.pop 256.0
  %v38 = vmul.f32 %v31, %v37
  %v39 = vmul.f32 %v36, %v37
  %v43 = vunpack.c.l.s4 839922192
  %v44 = vunpack.c.0.s8 %v43
  %v45 = vlaneseq
  %v46 = vshrl.u32 %v45, 7
  %v47 = vsub.s32 %v44, %v46
  %v48 = vrot.slane %v38, %v47
  %v50 = vunpack.c.l.s4 839922192
  %v51 = vunpack.c.0.s8 %v50
  %v52 = vlaneseq
  %v53 = vshrl.u32 %v52, 7
  %v54 = vsub.s32 %v51, %v53
  %v55 = vrot.slane %v39, %v54
  %v58 = vsub.f32 %v18, %v48
  %v59 = vsub.f32 %v19, %v55
  %v60 = vmul.f32 %v58, %v58
  %v61 = vmul.f32 %v59, %v59
  %v64 = vcombine.high %v60, %v60
  %v65 = vcombine.high %v61, %v61
  %v68 = vsel %vm26, %v60, 0.0
  %v69 = vsel %vm26, %v64, 0.0
  %v70 = vadd.f32 %v68, %v69
  %71 = vadd.xlane.f32.xlu0 %v70
  %v72 = vpop.xlane.xlu0 %71
  %v73 = vsel %vm26, %v61, 0.0
  %v74 = vsel %vm26, %v65, 0.0
  %v75 = vadd.f32 %v73, %v74
  %76 = vadd.xlane.f32.xlu0 %v75
  %v77 = vpop.xlane.xlu0 %76
  %vm78 = vcmask 3072
  %79 = vst.msk [vmem:[#allocation2] sm:$0xf] %vm78, %v38
  %80 = vst.msk [vmem:[#allocation2 + $0x4] sm:$0xf] %vm78, %v39
  %vm81 = vcmask 11272
  %82 = vst.msk [vmem:[#allocation2] sm:$0xf] %vm81, %v72
  %83 = vst.msk [vmem:[#allocation2 + $0x4] sm:$0xf] %vm81, %v77
  %s84 = sld [smem:[#allocation5]]
  %s85 = smul.u32 %s84, 4
  %s86 = scalar_lea.vmem [#allocation2], %s85
  %v87 = vld [vmem:[%s86] sm:$0xf]
  %vm88 = vcmask 11264
  %89 = vst.msk [vmem:[#allocation3] sm:$0xf] %vm88, %v87
  %s90 = sld [smem:[#allocation5 + $0x1]]
  %s91 = smul.u32 %s90, 4
  %s92 = scalar_lea.vmem [#allocation2], %s91
  %v93 = vld [vmem:[%s92] sm:$0xf]
  %s94 = scalar_lea.vmem [#allocation3], 4
  %95 = vst.msk [vmem:[%s94] sm:$0xf] %vm88, %v93
  %v96 = vld [vmem:[#allocation3] sm:$0xf]
  %v97 = vld [vmem:[#allocation3 + $0x4] sm:$0xf]
  %v98 = vmul.f32 %v72, 0.003921569
  %v99 = vmul.f32 %v77, 0.003921569
  %v100 = vadd.f32 %v98, 1e-05
  %v101 = vadd.f32 %v99, 1e-05
  %v102 = vrsqrt.pop %v100
  %v103 = vmul.f32 %v100, %v102
  %vm104 = vcmp.eq.f32.partialorder %v100, inf
  %v105 = vsel %vm104, %v100, %v103
  %vm106 = vcmp.eq.f32.partialorder %v100, 0.0
  %v107 = vand.u32 %v100, 2147483648
  %v108 = vsel %vm106, %v107, %v105
  %v109 = vrsqrt.pop %v101
  %v110 = vmul.f32 %v101, %v109
  %vm111 = vcmp.eq.f32.partialorder %v101, inf
  %v112 = vsel %vm111, %v101, %v110
  %vm113 = vcmp.eq.f32.partialorder %v101, 0.0
  %v114 = vand.u32 %v101, 2147483648
  %v115 = vsel %vm113, %v114, %v112
  %v116 = vmul.f32 %v96, 0.003921569
  %v117 = vmul.f32 %v97, 0.003921569
  %v118 = vadd.f32 %v116, 1e-05
  %v119 = vadd.f32 %v117, 1e-05
  %v120 = vrsqrt.pop %v118
  %v121 = vmul.f32 %v118, %v120
  %vm122 = vcmp.eq.f32.partialorder %v118, inf
  %v123 = vsel %vm122, %v118, %v121
  %vm124 = vcmp.eq.f32.partialorder %v118, 0.0
  %v125 = vand.u32 %v118, 2147483648
  %v126 = vsel %vm124, %v125, %v123
  %v127 = vrsqrt.pop %v119
  %v128 = vmul.f32 %v119, %v127
  %vm129 = vcmp.eq.f32.partialorder %v119, inf
  %v130 = vsel %vm129, %v119, %v128
  %vm131 = vcmp.eq.f32.partialorder %v119, 0.0
  %v132 = vand.u32 %v119, 2147483648
  %v133 = vsel %vm131, %v132, %v130
  %v134 = vadd.f32 %v108, 1e-05
  %v135 = vadd.f32 %v115, 1e-05
  %v136 = vrcp.pop %v134
  %v137 = vmul.f32 %v126, %v136
  %v138 = vrcp.pop %v135
  %v139 = vmul.f32 %v133, %v138
  %v140 = vmul.f32 %v38, %v137
  %v141 = vmul.f32 %v39, %v139
  %144 = vrot.lane.b32.xlu0 %v140, 127
  %v145 = vpop.permute.xlu0 %144
  %146 = vrot.lane.b32.xlu0 %v141, 127
  %v147 = vpop.permute.xlu0 %146
  %v150 = vsub.f32 %v96, %v145
  %v151 = vsub.f32 %v97, %v147
  %154 = vrot.lane.b32.xlu0 %v150, 1
  %v155 = vpop.permute.xlu0 %154
  %156 = vrot.lane.b32.xlu0 %v151, 1
  %v157 = vpop.permute.xlu0 %156
  %v160 = vadd.f32 %v140, %v155
  %v161 = vadd.f32 %v141, %v157
  %v162 = vmul.f32 %v137, %v137
  %v163 = vmul.f32 %v139, %v139
  %v164 = vmul.f32 %v72, 0.00390625
  %v165 = vmul.f32 %v77, 0.00390625
  %v166 = vmul.f32 %v162, %v164
  %v167 = vmul.f32 %v163, %v165
  %v168 = vsel %vm81, %v160, 0.0
  %v169 = vsel %vm81, %v161, 0.0
  %v170 = vadd.f32 %v168, %v169
  %v171 = vmul.f32 %v170, 0.5
  %v172 = vsub.f32 %v160, %v171
  %v173 = vsub.f32 %v161, %v171
  %v174 = vmul.f32 %v172, %v172
  %v175 = vmul.f32 %v173, %v173
  %v176 = vadd.f32 %v166, %v174
  %v177 = vadd.f32 %v167, %v175
  %v178 = vsel %vm81, %v176, 0.0
  %v179 = vsel %vm81, %v177, 0.0
  %v180 = vadd.f32 %v178, %v179
  %v181 = vmul.f32 %v180, 0.5
  %v182 = vld [vmem:[%s2] sm:$0xf]
  %s183 = scalar_lea.vmem %s2, 4
  %v184 = vld [vmem:[%s183] sm:$0xf]
  %v185 = vadd.f32 %v181, 1e-05
  %v186 = vrsqrt.pop %v185
  %188 = vrot.lane.b32.xlu0 %v182, 1
  %v189 = vpop.permute.xlu0 %188
  %v191 = vmul.f32 %v186, %v189
  %v192 = vmul.f32 %v137, %v191
  %v193 = vmul.f32 %v139, %v191
  %195 = vrot.lane.b32.xlu0 %v171, 127
  %v196 = vpop.permute.xlu0 %195
  %v198 = vsub.f32 %v150, %v196
  %v199 = vsub.f32 %v151, %v196
  %201 = vrot.lane.b32.xlu0 %v191, 127
  %v202 = vpop.permute.xlu0 %201
  %v204 = vmul.f32 %v198, %v202
  %v205 = vmul.f32 %v199, %v202
  %v206 = vadd.f32 %v204, %v184
  %v207 = vadd.f32 %v205, %v184
  %209 = vset.pattern.permute.xlu0 1
  %210 = vperm.xlu0 %209, %v192
  %v211 = vpop.permute.xlu0 %210
  %213 = vset.pattern.permute.xlu0 1
  %214 = vperm.xlu0 %213, %v193
  %v215 = vpop.permute.xlu0 %214
  %v217 = vunpack.c.l.s4 839922192
  %v218 = vunpack.c.0.s8 %v217
  %v219 = vlaneseq
  %v220 = vshrl.u32 %v219, 7
  %v221 = vsub.s32 %v218, %v220
  %v222 = vrot.slane %v211, %v221
  %v224 = vunpack.c.l.s4 839922192
  %v225 = vunpack.c.0.s8 %v224
  %v226 = vlaneseq
  %v227 = vshrl.u32 %v226, 7
  %v228 = vsub.s32 %v225, %v227
  %v229 = vrot.slane %v215, %v228
  %v232 = vmul.f32 %v18, %v222
  %v233 = vmul.f32 %v19, %v229
  %235 = vset.pattern.permute.xlu0 0
  %236 = vperm.xlu0 %235, %v206
  %v237 = vpop.permute.xlu0 %236
  %239 = vset.pattern.permute.xlu0 0
  %240 = vperm.xlu0 %239, %v207
  %v241 = vpop.permute.xlu0 %240
  %v243 = vunpack.c.l.s4 839922192
  %v244 = vunpack.c.0.s8 %v243
  %v245 = vlaneseq
  %v246 = vshrl.u32 %v245, 7
  %v247 = vsub.s32 %v244, %v246
  %v248 = vrot.slane %v237, %v247
  %v250 = vunpack.c.l.s4 839922192
  %v251 = vunpack.c.0.s8 %v250
  %v252 = vlaneseq
  %v253 = vshrl.u32 %v252, 7
  %v254 = vsub.s32 %v251, %v253
  %v255 = vrot.slane %v241, %v254
  %v258 = vadd.f32 %v232, %v248
  %v259 = vadd.f32 %v233, %v255
  %260 = vst [vmem:[%s3] sm:$0xff] %v258
  %261 = vst [vmem:[%s3 + $0x8] sm:$0xff] %v259
  // Predicated region
  $region10: #{padain_with_batchnorm2d.1} parent=0 // pred_check
    _
  $region11: #{padain_with_batchnorm2d.1} parent=0 // pred_check_branch
    %263 = sbr.rel (0) target = $region13
  $region12: #{padain_with_batchnorm2d.1} parent=0 // pred_region
    _
  $region13: #{padain_with_batchnorm2d.1} parent=0 // pred_fallthru
    _
  // Predicated region
  $region14: #{padain_with_batchnorm2d.1} parent=0 // pred_check
    _
  $region15: #{padain_with_batchnorm2d.1} parent=0 // pred_check_branch
    %265 = sbr.rel (0) target = $region17
  $region16: #{padain_with_batchnorm2d.1} parent=0 // pred_region
    _
  $region17: #{padain_with_batchnorm2d.1} parent=0 // pred_fallthru
    _

</llo_original>
